<compile_context>
chip_gen: v6e
topology: v6e:2x2x1
jax: 0.10.0
libtpu: 0.0.40
codegen_flags: <defaults>
</compile_context>

<pallas_src>
import functools

import jax
import jax.numpy as jnp
from jax.experimental import pallas as pl
from jax.experimental.pallas import tpu as pltpu


def _head_classes_kernel(x_ref, w_ref, b_ref, o_ref, *,
                         nclasses, ninputs, apply_softmax):
    # x_ref: (Cin, T) VMEM   w_ref: (K, Cin) SMEM   b_ref: (K,) SMEM
    # o_ref: (K, T) VMEM     (T = spatial tile, multiple of 128 -> lane-dense)

    # Load each input-channel row once (lane-dense (1, T) slabs), reuse for all classes.
    rows = [x_ref[c:c + 1, :].astype(jnp.float32) for c in range(ninputs)]

    # Unrolled broadcast-FMA "matmul": logits[k] = sum_c w[k,c] * x[c,:] + b[k]
    logits = []
    for k in range(nclasses):
        acc = rows[0] * w_ref[k, 0]
        for c in range(1, ninputs):
            acc = acc + rows[c] * w_ref[k, c]
        acc = acc + b_ref[k]
        logits.append(acc)  # (1, T) f32

    if apply_softmax:
        # Reduction over K done as unrolled elementwise ops (stays on VPU).
        m = logits[0]
        for k in range(1, nclasses):
            m = jnp.maximum(m, logits[k])
        exps = [jnp.exp(l - m) for l in logits]
        s = exps[0]
        for k in range(1, nclasses):
            s = s + exps[k]
        inv = pl.reciprocal(s, approx=True)  # EUP slot, ~free
        vals = [e * inv for e in exps]
    else:
        vals = logits

    for k in range(nclasses):
        o_ref[k:k + 1, :] = vals[k].astype(o_ref.dtype)


def _pick_tile(hw_pad, lane=128, max_tile=16384):
    """Largest multiple of `lane` that divides hw_pad and is <= max_tile."""
    q = hw_pad // lane
    best = 1
    for d in range(1, q + 1):
        if q % d == 0 and d * lane <= max_tile:
            best = d
    return best * lane


def head_classes_forward(x_nchw, weight, bias, *, training=False):
    """Equivalent of HeadClasses.forward.

    x_nchw : (N, Cin, H, W)
    weight : (K, Cin)   -- 1x1 conv kernel, squeezed from (K, Cin, 1, 1)
    bias   : (K,)
    returns: (N, K, H, W)   (softmax over K if not training)
    """
    N, Cin, H, W = x_nchw.shape
    K = weight.shape[0]
    HW = H * W
    LANE = 128

    # Free reshape: NCHW is contiguous, so (N, Cin, H*W) needs no data movement.
    x_flat = x_nchw.reshape(N, Cin, HW)

    # Only pad lanes if H*W is not a multiple of 128 (not hit for typical shapes).
    HW_pad = ((HW + LANE - 1) // LANE) * LANE
    if HW_pad != HW:
        x_flat = jnp.pad(x_flat, ((0, 0), (0, 0), (0, HW_pad - HW)))

    tile = _pick_tile(HW_pad)
    grid = (N, HW_pad // tile)

    w_smem = weight.astype(jnp.float32)   # (K, Cin) -> SMEM scalars
    b_smem = bias.astype(jnp.float32)     # (K,)     -> SMEM scalars

    kernel = functools.partial(_head_classes_kernel,
                               nclasses=K, ninputs=Cin,
                               apply_softmax=not training)

    out = pl.pallas_call(
        kernel,
        out_shape=jax.ShapeDtypeStruct((N, K, HW_pad), x_nchw.dtype),
        grid_spec=pltpu.PrefetchScalarGridSpec(
            num_scalar_prefetch=0,
            grid=grid,
            in_specs=[
                # Activations: (Cin, tile) lane-dense block per (image, hw-tile).
                pl.BlockSpec((None, Cin, tile), lambda n, j: (n, 0, j)),
                # Weights and bias live in SMEM (read as scalars in the kernel).
                pl.BlockSpec(memory_space=pltpu.MemorySpace.SMEM),
                pl.BlockSpec(memory_space=pltpu.MemorySpace.SMEM),
            ],
            out_specs=pl.BlockSpec((None, K, tile), lambda n, j: (n, 0, j)),
        ),
        compiler_params=pltpu.CompilerParams(
            # Both axes independent -> sharded across TensorCores on v7x.
            dimension_semantics=("parallel", "parallel")),
    )(x_flat, w_smem, b_smem)

    if HW_pad != HW:
        out = out[:, :, :HW]
    return out.reshape(N, K, H, W)


if __name__ == "__main__":
    # Small shapes consistent with the module: batch=2, ninputs=4, nclasses=5, spatial=16.
    N, Cin, H, W = 2, 4, 16, 16
    K = 5

    key = jax.random.PRNGKey(0)
    kx, kw, kb = jax.random.split(key, 3)

    x = jax.random.normal(kx, (N, Cin, H, W), dtype=jnp.float32)

    # Deterministic parameter init (mimics conv2d default uniform(-1/sqrt(fan_in), +)).
    bound = 1.0 / (Cin ** 0.5)
    weight = jax.random.uniform(kw, (K, Cin), minval=-bound, maxval=bound,
                                dtype=jnp.float32)
    bias = jax.random.uniform(kb, (K,), minval=-bound, maxval=bound,
                              dtype=jnp.float32)

    # Eval mode (not training) => softmax over class dim, like the PyTorch module.
    out = head_classes_forward(x, weight, bias, training=False)
    out = jax.block_until_ready(out)

    # Pure-JAX reference (1x1 conv == per-pixel linear over channels, then softmax).
    logits_ref = jnp.einsum("kc,nchw->nkhw", weight, x) + bias[None, :, None, None]
    ref = jax.nn.softmax(logits_ref, axis=1)

    assert out.shape == (N, K, H, W)
    # Slightly loose tolerance because the softmax denominator uses the
    # hardware approximate reciprocal (pl.reciprocal(approx=True)).
    assert jnp.allclose(out, ref, atol=3e-3, rtol=3e-3), float(jnp.max(jnp.abs(out - ref)))
    sums = jnp.sum(out, axis=1)
    assert jnp.allclose(sums, 1.0, atol=5e-3)

    print("KERNEL_OK")
</pallas_src>

<mosaic_0001>
module attributes {stable_mosaic.version = 11 : i64} {
  func.func @_head_classes_kernel(%arg0: i32, %arg1: i32, %arg2: memref<1x4x256xf32, #tpu.memory_space<vmem>>, %arg3: memref<5x4xf32, #tpu.memory_space<smem>>, %arg4: memref<5xf32, #tpu.memory_space<smem>>, %arg5: memref<1x5x256xf32, #tpu.memory_space<vmem>>) attributes {dimension_semantics = [#tpu.dimension_semantics<parallel>, #tpu.dimension_semantics<parallel>], iteration_bounds = array<i64: 2, 1>, scalar_prefetch = 0 : i64, scratch_operands = 0 : i64, tpu.core_type = #tpu.core_type<tc>, window_params = [{transform_indices = @transform_0, window_bounds = array<i64: 1, 4, 256>}, {transform_indices = @transform_1, window_bounds = array<i64: 5, 4>}, {transform_indices = @transform_2, window_bounds = array<i64: 5>}, {transform_indices = @transform_3, window_bounds = array<i64: 1, 5, 256>}]} {
    %c0 = arith.constant 0 : index
    %c0_0 = arith.constant 0 : index
    %c0_1 = arith.constant 0 : index
    %0 = vector.load %arg2[%c0, %c0_0, %c0_1] : memref<1x4x256xf32, #tpu.memory_space<vmem>>, vector<1x1x256xf32>
    %1 = vector.shape_cast %0 : vector<1x1x256xf32> to vector<1x256xf32>
    %c0_2 = arith.constant 0 : index
    %c1 = arith.constant 1 : index
    %c0_3 = arith.constant 0 : index
    %2 = vector.load %arg2[%c0_2, %c1, %c0_3] : memref<1x4x256xf32, #tpu.memory_space<vmem>>, vector<1x1x256xf32>
    %3 = vector.shape_cast %2 : vector<1x1x256xf32> to vector<1x256xf32>
    %c0_4 = arith.constant 0 : index
    %c2 = arith.constant 2 : index
    %c0_5 = arith.constant 0 : index
    %4 = vector.load %arg2[%c0_4, %c2, %c0_5] : memref<1x4x256xf32, #tpu.memory_space<vmem>>, vector<1x1x256xf32>
    %5 = vector.shape_cast %4 : vector<1x1x256xf32> to vector<1x256xf32>
    %c0_6 = arith.constant 0 : index
    %c3 = arith.constant 3 : index
    %c0_7 = arith.constant 0 : index
    %6 = vector.load %arg2[%c0_6, %c3, %c0_7] : memref<1x4x256xf32, #tpu.memory_space<vmem>>, vector<1x1x256xf32>
    %7 = vector.shape_cast %6 : vector<1x1x256xf32> to vector<1x256xf32>
    %c0_8 = arith.constant 0 : index
    %c0_9 = arith.constant 0 : index
    %8 = memref.load %arg3[%c0_8, %c0_9] : memref<5x4xf32, #tpu.memory_space<smem>>
    %9 = vector.broadcast %8 : f32 to vector<1x256xf32>
    %10 = arith.mulf %1, %9 : vector<1x256xf32>
    %c0_10 = arith.constant 0 : index
    %c1_11 = arith.constant 1 : index
    %11 = memref.load %arg3[%c0_10, %c1_11] : memref<5x4xf32, #tpu.memory_space<smem>>
    %12 = vector.broadcast %11 : f32 to vector<1x256xf32>
    %13 = arith.mulf %3, %12 : vector<1x256xf32>
    %14 = arith.addf %10, %13 : vector<1x256xf32>
    %c0_12 = arith.constant 0 : index
    %c2_13 = arith.constant 2 : index
    %15 = memref.load %arg3[%c0_12, %c2_13] : memref<5x4xf32, #tpu.memory_space<smem>>
    %16 = vector.broadcast %15 : f32 to vector<1x256xf32>
    %17 = arith.mulf %5, %16 : vector<1x256xf32>
    %18 = arith.addf %14, %17 : vector<1x256xf32>
    %c0_14 = arith.constant 0 : index
    %c3_15 = arith.constant 3 : index
    %19 = memref.load %arg3[%c0_14, %c3_15] : memref<5x4xf32, #tpu.memory_space<smem>>
    %20 = vector.broadcast %19 : f32 to vector<1x256xf32>
    %21 = arith.mulf %7, %20 : vector<1x256xf32>
    %22 = arith.addf %18, %21 : vector<1x256xf32>
    %c0_16 = arith.constant 0 : index
    %23 = memref.load %arg4[%c0_16] : memref<5xf32, #tpu.memory_space<smem>>
    %24 = vector.broadcast %23 : f32 to vector<1x256xf32>
    %25 = arith.addf %22, %24 : vector<1x256xf32>
    %c1_17 = arith.constant 1 : index
    %c0_18 = arith.constant 0 : index
    %26 = memref.load %arg3[%c1_17, %c0_18] : memref<5x4xf32, #tpu.memory_space<smem>>
    %27 = vector.broadcast %26 : f32 to vector<1x256xf32>
    %28 = arith.mulf %1, %27 : vector<1x256xf32>
    %c1_19 = arith.constant 1 : index
    %c1_20 = arith.constant 1 : index
    %29 = memref.load %arg3[%c1_19, %c1_20] : memref<5x4xf32, #tpu.memory_space<smem>>
    %30 = vector.broadcast %29 : f32 to vector<1x256xf32>
    %31 = arith.mulf %3, %30 : vector<1x256xf32>
    %32 = arith.addf %28, %31 : vector<1x256xf32>
    %c1_21 = arith.constant 1 : index
    %c2_22 = arith.constant 2 : index
    %33 = memref.load %arg3[%c1_21, %c2_22] : memref<5x4xf32, #tpu.memory_space<smem>>
    %34 = vector.broadcast %33 : f32 to vector<1x256xf32>
    %35 = arith.mulf %5, %34 : vector<1x256xf32>
    %36 = arith.addf %32, %35 : vector<1x256xf32>
    %c1_23 = arith.constant 1 : index
    %c3_24 = arith.constant 3 : index
    %37 = memref.load %arg3[%c1_23, %c3_24] : memref<5x4xf32, #tpu.memory_space<smem>>
    %38 = vector.broadcast %37 : f32 to vector<1x256xf32>
    %39 = arith.mulf %7, %38 : vector<1x256xf32>
    %40 = arith.addf %36, %39 : vector<1x256xf32>
    %c1_25 = arith.constant 1 : index
    %41 = memref.load %arg4[%c1_25] : memref<5xf32, #tpu.memory_space<smem>>
    %42 = vector.broadcast %41 : f32 to vector<1x256xf32>
    %43 = arith.addf %40, %42 : vector<1x256xf32>
    %c2_26 = arith.constant 2 : index
    %c0_27 = arith.constant 0 : index
    %44 = memref.load %arg3[%c2_26, %c0_27] : memref<5x4xf32, #tpu.memory_space<smem>>
    %45 = vector.broadcast %44 : f32 to vector<1x256xf32>
    %46 = arith.mulf %1, %45 : vector<1x256xf32>
    %c2_28 = arith.constant 2 : index
    %c1_29 = arith.constant 1 : index
    %47 = memref.load %arg3[%c2_28, %c1_29] : memref<5x4xf32, #tpu.memory_space<smem>>
    %48 = vector.broadcast %47 : f32 to vector<1x256xf32>
    %49 = arith.mulf %3, %48 : vector<1x256xf32>
    %50 = arith.addf %46, %49 : vector<1x256xf32>
    %c2_30 = arith.constant 2 : index
    %c2_31 = arith.constant 2 : index
    %51 = memref.load %arg3[%c2_30, %c2_31] : memref<5x4xf32, #tpu.memory_space<smem>>
    %52 = vector.broadcast %51 : f32 to vector<1x256xf32>
    %53 = arith.mulf %5, %52 : vector<1x256xf32>
    %54 = arith.addf %50, %53 : vector<1x256xf32>
    %c2_32 = arith.constant 2 : index
    %c3_33 = arith.constant 3 : index
    %55 = memref.load %arg3[%c2_32, %c3_33] : memref<5x4xf32, #tpu.memory_space<smem>>
    %56 = vector.broadcast %55 : f32 to vector<1x256xf32>
    %57 = arith.mulf %7, %56 : vector<1x256xf32>
    %58 = arith.addf %54, %57 : vector<1x256xf32>
    %c2_34 = arith.constant 2 : index
    %59 = memref.load %arg4[%c2_34] : memref<5xf32, #tpu.memory_space<smem>>
    %60 = vector.broadcast %59 : f32 to vector<1x256xf32>
    %61 = arith.addf %58, %60 : vector<1x256xf32>
    %c3_35 = arith.constant 3 : index
    %c0_36 = arith.constant 0 : index
    %62 = memref.load %arg3[%c3_35, %c0_36] : memref<5x4xf32, #tpu.memory_space<smem>>
    %63 = vector.broadcast %62 : f32 to vector<1x256xf32>
    %64 = arith.mulf %1, %63 : vector<1x256xf32>
    %c3_37 = arith.constant 3 : index
    %c1_38 = arith.constant 1 : index
    %65 = memref.load %arg3[%c3_37, %c1_38] : memref<5x4xf32, #tpu.memory_space<smem>>
    %66 = vector.broadcast %65 : f32 to vector<1x256xf32>
    %67 = arith.mulf %3, %66 : vector<1x256xf32>
    %68 = arith.addf %64, %67 : vector<1x256xf32>
    %c3_39 = arith.constant 3 : index
    %c2_40 = arith.constant 2 : index
    %69 = memref.load %arg3[%c3_39, %c2_40] : memref<5x4xf32, #tpu.memory_space<smem>>
    %70 = vector.broadcast %69 : f32 to vector<1x256xf32>
    %71 = arith.mulf %5, %70 : vector<1x256xf32>
    %72 = arith.addf %68, %71 : vector<1x256xf32>
    %c3_41 = arith.constant 3 : index
    %c3_42 = arith.constant 3 : index
    %73 = memref.load %arg3[%c3_41, %c3_42] : memref<5x4xf32, #tpu.memory_space<smem>>
    %74 = vector.broadcast %73 : f32 to vector<1x256xf32>
    %75 = arith.mulf %7, %74 : vector<1x256xf32>
    %76 = arith.addf %72, %75 : vector<1x256xf32>
    %c3_43 = arith.constant 3 : index
    %77 = memref.load %arg4[%c3_43] : memref<5xf32, #tpu.memory_space<smem>>
    %78 = vector.broadcast %77 : f32 to vector<1x256xf32>
    %79 = arith.addf %76, %78 : vector<1x256xf32>
    %c4 = arith.constant 4 : index
    %c0_44 = arith.constant 0 : index
    %80 = memref.load %arg3[%c4, %c0_44] : memref<5x4xf32, #tpu.memory_space<smem>>
    %81 = vector.broadcast %80 : f32 to vector<1x256xf32>
    %82 = arith.mulf %1, %81 : vector<1x256xf32>
    %c4_45 = arith.constant 4 : index
    %c1_46 = arith.constant 1 : index
    %83 = memref.load %arg3[%c4_45, %c1_46] : memref<5x4xf32, #tpu.memory_space<smem>>
    %84 = vector.broadcast %83 : f32 to vector<1x256xf32>
    %85 = arith.mulf %3, %84 : vector<1x256xf32>
    %86 = arith.addf %82, %85 : vector<1x256xf32>
    %c4_47 = arith.constant 4 : index
    %c2_48 = arith.constant 2 : index
    %87 = memref.load %arg3[%c4_47, %c2_48] : memref<5x4xf32, #tpu.memory_space<smem>>
    %88 = vector.broadcast %87 : f32 to vector<1x256xf32>
    %89 = arith.mulf %5, %88 : vector<1x256xf32>
    %90 = arith.addf %86, %89 : vector<1x256xf32>
    %c4_49 = arith.constant 4 : index
    %c3_50 = arith.constant 3 : index
    %91 = memref.load %arg3[%c4_49, %c3_50] : memref<5x4xf32, #tpu.memory_space<smem>>
    %92 = vector.broadcast %91 : f32 to vector<1x256xf32>
    %93 = arith.mulf %7, %92 : vector<1x256xf32>
    %94 = arith.addf %90, %93 : vector<1x256xf32>
    %c4_51 = arith.constant 4 : index
    %95 = memref.load %arg4[%c4_51] : memref<5xf32, #tpu.memory_space<smem>>
    %96 = vector.broadcast %95 : f32 to vector<1x256xf32>
    %97 = arith.addf %94, %96 : vector<1x256xf32>
    %98 = arith.maximumf %25, %43 : vector<1x256xf32>
    %99 = arith.maximumf %98, %61 : vector<1x256xf32>
    %100 = arith.maximumf %99, %79 : vector<1x256xf32>
    %101 = arith.maximumf %100, %97 : vector<1x256xf32>
    %102 = arith.subf %25, %101 : vector<1x256xf32>
    %103 = math.exp %102 : vector<1x256xf32>
    %104 = arith.subf %43, %101 : vector<1x256xf32>
    %105 = math.exp %104 : vector<1x256xf32>
    %106 = arith.subf %61, %101 : vector<1x256xf32>
    %107 = math.exp %106 : vector<1x256xf32>
    %108 = arith.subf %79, %101 : vector<1x256xf32>
    %109 = math.exp %108 : vector<1x256xf32>
    %110 = arith.subf %97, %101 : vector<1x256xf32>
    %111 = math.exp %110 : vector<1x256xf32>
    %112 = arith.addf %103, %105 : vector<1x256xf32>
    %113 = arith.addf %112, %107 : vector<1x256xf32>
    %114 = arith.addf %113, %109 : vector<1x256xf32>
    %115 = arith.addf %114, %111 : vector<1x256xf32>
    %116 = tpu.reciprocal %115 {approx = true} : vector<1x256xf32> -> vector<1x256xf32>
    %117 = arith.mulf %103, %116 : vector<1x256xf32>
    %118 = arith.mulf %105, %116 : vector<1x256xf32>
    %119 = arith.mulf %107, %116 : vector<1x256xf32>
    %120 = arith.mulf %109, %116 : vector<1x256xf32>
    %121 = arith.mulf %111, %116 : vector<1x256xf32>
    %c0_52 = arith.constant 0 : index
    %c0_53 = arith.constant 0 : index
    %c0_54 = arith.constant 0 : index
    %122 = vector.load %arg5[%c0_52, %c0_53, %c0_54] : memref<1x5x256xf32, #tpu.memory_space<vmem>>, vector<1x1x256xf32>
    %123 = vector.shape_cast %122 : vector<1x1x256xf32> to vector<1x256xf32>
    %124 = vector.shape_cast %117 : vector<1x256xf32> to vector<1x1x256xf32>
    tpu.vector_store %arg5[%c0_52, %c0_53, %c0_54], %124 {strides = array<i32>} : memref<1x5x256xf32, #tpu.memory_space<vmem>>, vector<1x1x256xf32>,
    %c0_55 = arith.constant 0 : index
    %c1_56 = arith.constant 1 : index
    %c0_57 = arith.constant 0 : index
    %125 = vector.load %arg5[%c0_55, %c1_56, %c0_57] : memref<1x5x256xf32, #tpu.memory_space<vmem>>, vector<1x1x256xf32>
    %126 = vector.shape_cast %125 : vector<1x1x256xf32> to vector<1x256xf32>
    %127 = vector.shape_cast %118 : vector<1x256xf32> to vector<1x1x256xf32>
    tpu.vector_store %arg5[%c0_55, %c1_56, %c0_57], %127 {strides = array<i32>} : memref<1x5x256xf32, #tpu.memory_space<vmem>>, vector<1x1x256xf32>,
    %c0_58 = arith.constant 0 : index
    %c2_59 = arith.constant 2 : index
    %c0_60 = arith.constant 0 : index
    %128 = vector.load %arg5[%c0_58, %c2_59, %c0_60] : memref<1x5x256xf32, #tpu.memory_space<vmem>>, vector<1x1x256xf32>
    %129 = vector.shape_cast %128 : vector<1x1x256xf32> to vector<1x256xf32>
    %130 = vector.shape_cast %119 : vector<1x256xf32> to vector<1x1x256xf32>
    tpu.vector_store %arg5[%c0_58, %c2_59, %c0_60], %130 {strides = array<i32>} : memref<1x5x256xf32, #tpu.memory_space<vmem>>, vector<1x1x256xf32>,
    %c0_61 = arith.constant 0 : index
    %c3_62 = arith.constant 3 : index
    %c0_63 = arith.constant 0 : index
    %131 = vector.load %arg5[%c0_61, %c3_62, %c0_63] : memref<1x5x256xf32, #tpu.memory_space<vmem>>, vector<1x1x256xf32>
    %132 = vector.shape_cast %131 : vector<1x1x256xf32> to vector<1x256xf32>
    %133 = vector.shape_cast %120 : vector<1x256xf32> to vector<1x1x256xf32>
    tpu.vector_store %arg5[%c0_61, %c3_62, %c0_63], %133 {strides = array<i32>} : memref<1x5x256xf32, #tpu.memory_space<vmem>>, vector<1x1x256xf32>,
    %c0_64 = arith.constant 0 : index
    %c4_65 = arith.constant 4 : index
    %c0_66 = arith.constant 0 : index
    %134 = vector.load %arg5[%c0_64, %c4_65, %c0_66] : memref<1x5x256xf32, #tpu.memory_space<vmem>>, vector<1x1x256xf32>
    %135 = vector.shape_cast %134 : vector<1x1x256xf32> to vector<1x256xf32>
    %136 = vector.shape_cast %121 : vector<1x256xf32> to vector<1x1x256xf32>
    tpu.vector_store %arg5[%c0_64, %c4_65, %c0_66], %136 {strides = array<i32>} : memref<1x5x256xf32, #tpu.memory_space<vmem>>, vector<1x1x256xf32>,
    return
  }
  func.func @transform_0(%arg0: i32, %arg1: i32) -> (i32, i32, i32) {
    %c0_i32 = arith.constant 0 : i32
    %c0_i32_0 = arith.constant 0 : i32
    return %arg0, %c0_i32, %arg1 : i32, i32, i32
  }
  func.func @transform_1(%arg0: i32, %arg1: i32) -> (i32, i32) {
    %c0_i32 = arith.constant 0 : i32
    %c0_i32_0 = arith.constant 0 : i32
    %c0_i32_1 = arith.constant 0 : i32
    return %c0_i32, %c0_i32_0 : i32, i32
  }
  func.func @transform_2(%arg0: i32, %arg1: i32) -> i32 {
    %c0_i32 = arith.constant 0 : i32
    %c0_i32_0 = arith.constant 0 : i32
    return %c0_i32 : i32
  }
  func.func @transform_3(%arg0: i32, %arg1: i32) -> (i32, i32, i32) {
    %c0_i32 = arith.constant 0 : i32
    %c0_i32_0 = arith.constant 0 : i32
    return %arg0, %c0_i32, %arg1 : i32, i32, i32
  }
}

</mosaic_0001>

<llo_original>
// kernel: tpu_custom_call.1
$region0: #{tpu_custom_call.1}
  #allocation0 [shape = 'u32[]', space=smem, size = 0x4, offset = 0x4, fixed_abs, tag = 'smem constant byte address 0x4 - core index']
  #allocation1 [shape = 'u32[144,128]{1,0:T(1,128)}', space=vmem, size = 0x12000, scoped, tag = 'internal scratch']
  %s0 = inlined_call_operand.hbm [shape: f32[2,4,256], index: 0, kind: input, shape index: {}]
  %s1 = inlined_call_operand.vmem [shape: f32[5,4], index: 1, kind: input, shape index: {}]
  %s2 = inlined_call_operand.vmem [shape: f32[5], index: 2, kind: input, shape index: {}]
  %s3 = inlined_call_operand.vmem [shape: f32[2,5,256], index: 3, kind: output, shape index: {}]
  %s4 = sld [smem:[#allocation0]]
  $region57: #{tpu_custom_call.1} parent=0
    _
  %s6 = ssub.s32 1, %s4
  %s7 = scalar_select 0, %s6, %s4
  $region1: #{tpu_custom_call.1} parent=0
    #allocation2 [shape = 'u8[8192]{0}', space=vmem, size = 0x2000, scoped, tag = 'input window, operand 0']
    #allocation3 [shape = 's32[2]{0}', space=sflag, size = 0x8, scoped, tag = 'scoped memory for tpu_custom_call.1']
    #allocation4 [shape = 's32[2]{0}', space=sflag, size = 0x8, scoped, tag = 'scoped memory for tpu_custom_call.1']
    #allocation5 [shape = 'u8[4096]{0}', space=smem, size = 0x1000, scoped, tag = 'input window, operand 1, single buffered']
    #allocation6 [shape = 'u8[512]{0}', space=smem, size = 0x200, scoped, tag = 'input window, operand 2, single buffered']
    #allocation7 [shape = 's32[1]{0}', space=sflag, size = 0x4, scoped, tag = 'scoped memory for tpu_custom_call.1']
    %8 = vsyncpa [#allocation3], 0
    %s9 = scalar_lea.sflag [#allocation3], 1
    %10 = vsyncpa %s9, 0
    %11 = vsyncpa [#allocation4], 0
    %12 = vsyncpa [#allocation7], 0
    loop: start=0, step=1, limit=4
    $region2: #{tpu_custom_call.1} parent=1 // loop_pre_header
      _
    $region3: #{tpu_custom_call.1} parent=1 // loop_header
      %s14 = sphi 0, %s18
      %p15 = scmp.ge.s32.totalorder %s14, 4
      %s21 = sphi 0, %s33
      %s22 = sphi 0, %s29
      %s23 = sphi 0, %s21
      %s24 = sphi 0, %s22
      %s25 = sphi 0, %s23
      %s26 = sphi 0, %s24
      %s38 = sphi 0, %s40
      %s41 = sphi 0, %s38
      %s42 = sphi 0, %s41
      %s58 = sphi 0, %s42
      %s62 = sphi 0, %s62
      %s64 = sphi 0, %s62
      %s65 = sphi 0, %s64
      %s79 = sphi 0, %s65
      %s83 = sphi 0, %s83
      %s85 = sphi 0, %s83
      %s86 = sphi 0, %s85
      %s100 = sphi 0, %s86
      %s108 = sphi 0, %s110
      %s111 = sphi 0, %s108
      %s112 = sphi 0, %s111
      %s128 = sphi 0, %s112
    $region4: #{tpu_custom_call.1} parent=1 // loop_header_branch
      %17 = sbr.rel (%p15) target = $region8
    $region5: #{tpu_custom_call.1} parent=1 // loop_body
      %s19 = ssub.s32 %s14, 1
      %s20 = ssub.s32 %s14, 2
      %s27 = sadd.s32 1, %s22
      %p28 = scmp.ge.s32.totalorder %s27, 1
      %s29 = scalar_select %p28, 0, %s27
      %s30 = sadd.s32 1, %s21
      %s31 = scalar_select %p28, %s30, %s21
      %p32 = scmp.ge.s32.totalorder %s31, 2
      %s33 = scalar_select %p32, 0, %s31
      %s34 = ssub.s32 %s21, %s33
      %s35 = ssub.s32 %s22, %s29
      %s36 = sor.u32 %s34, %s35
      %p37 = scmp.eq.s32.totalorder %s36, 0
      %s39 = sadd.s32 %s38, 1
      %s40 = scalar_select %p37, %s38, %s39
      %p43 = pneg %p37
      %p44 = scmp.eq.s32.totalorder %s14, 1
      %p45 = por %p43, %p44
      %p46 = scmp.ne.s32.totalorder %s38, %s41
      %p47 = scmp.eq.s32.totalorder %s14, 0
      %p48 = por %p46, %p47
      %p49 = scmp.ne.s32.totalorder %s38, %s41
      %p50 = scmp.eq.s32.totalorder %s19, 1
      %p51 = por %p49, %p50
      %p52 = scmp.ne.s32.totalorder %s41, %s42
      %p53 = scmp.eq.s32.totalorder %s19, 0
      %p54 = por %p52, %p53
      %p55 = scmp.ne.s32.totalorder %s41, %s42
      %p56 = scmp.eq.s32.totalorder %s20, 1
      %p57 = por %p55, %p56
      %p59 = scmp.ne.s32.totalorder %s42, %s58
      %p60 = scmp.eq.s32.totalorder %s20, 0
      %p61 = por %p59, %p60
      %s63 = sadd.s32 %s62, 1
      %p66 = scmp.eq.s32.totalorder %s14, 1
      %p67 = scmp.ne.s32.totalorder %s62, %s64
      %p68 = scmp.eq.s32.totalorder %s14, 0
      %p69 = por %p67, %p68
      %p70 = scmp.ne.s32.totalorder %s62, %s64
      %p71 = scmp.eq.s32.totalorder %s19, 1
      %p72 = por %p70, %p71
      %p73 = scmp.ne.s32.totalorder %s64, %s65
      %p74 = scmp.eq.s32.totalorder %s19, 0
      %p75 = por %p73, %p74
      %p76 = scmp.ne.s32.totalorder %s64, %s65
      %p77 = scmp.eq.s32.totalorder %s20, 1
      %p78 = por %p76, %p77
      %p80 = scmp.ne.s32.totalorder %s65, %s79
      %p81 = scmp.eq.s32.totalorder %s20, 0
      %p82 = por %p80, %p81
      %s84 = sadd.s32 %s83, 1
      %p87 = scmp.eq.s32.totalorder %s14, 1
      %p88 = scmp.ne.s32.totalorder %s83, %s85
      %p89 = scmp.eq.s32.totalorder %s14, 0
      %p90 = por %p88, %p89
      %p91 = scmp.ne.s32.totalorder %s83, %s85
      %p92 = scmp.eq.s32.totalorder %s19, 1
      %p93 = por %p91, %p92
      %p94 = scmp.ne.s32.totalorder %s85, %s86
      %p95 = scmp.eq.s32.totalorder %s19, 0
      %p96 = por %p94, %p95
      %p97 = scmp.ne.s32.totalorder %s85, %s86
      %p98 = scmp.eq.s32.totalorder %s20, 1
      %p99 = por %p97, %p98
      %p101 = scmp.ne.s32.totalorder %s86, %s100
      %p102 = scmp.eq.s32.totalorder %s20, 0
      %p103 = por %p101, %p102
      %s104 = ssub.s32 %s21, %s33
      %s105 = ssub.s32 %s22, %s29
      %s106 = sor.u32 %s104, %s105
      %p107 = scmp.eq.s32.totalorder %s106, 0
      %s109 = sadd.s32 %s108, 1
      %s110 = scalar_select %p107, %s108, %s109
      %p113 = pneg %p107
      %p114 = scmp.eq.s32.totalorder %s14, 1
      %p115 = por %p113, %p114
      %p116 = scmp.ne.s32.totalorder %s108, %s111
      %p117 = scmp.eq.s32.totalorder %s14, 0
      %p118 = por %p116, %p117
      %p119 = scmp.ne.s32.totalorder %s108, %s111
      %p120 = scmp.eq.s32.totalorder %s19, 1
      %p121 = por %p119, %p120
      %p122 = scmp.ne.s32.totalorder %s111, %s112
      %p123 = scmp.eq.s32.totalorder %s19, 0
      %p124 = por %p122, %p123
      %p125 = scmp.ne.s32.totalorder %s111, %s112
      %p126 = scmp.eq.s32.totalorder %s20, 1
      %p127 = por %p125, %p126
      %p129 = scmp.ne.s32.totalorder %s112, %s128
      %p130 = scmp.eq.s32.totalorder %s20, 0
      %p131 = por %p129, %p130
      %p132 = scmp.le.s32.totalorder 1, %s14
      %p133 = scmp.lt.s32.totalorder %s14, 3
      %p134 = pnand %p132, %p133
      %p135 = pneg %p134
      // Predicated region
      $region9: #{tpu_custom_call.1} parent=5 // pred_check
        _
      $region10: #{tpu_custom_call.1} parent=5 // pred_check_branch
        %137 = sbr.rel (%p134) target = $region12
      $region11: #{tpu_custom_call.1} parent=5 // pred_region
        %s138 = ssub.s32 %s14, 1
        // Predicated region
        $region13: #{tpu_custom_call.1} parent=11 // pred_check
          %p139 = pneg %p75
        $region14: #{tpu_custom_call.1} parent=11 // pred_check_branch
          %141 = sbr.rel (%p139) target = $region16
        $region15: #{tpu_custom_call.1} parent=11 // pred_region
          %s143 = ssub.s32 128, 128
          %144 = vsyncadd [#allocation4], %s143
          %s146 = sshll.u32 %s1, 4
          %s147 = int_to_ptr.vmem [resolvable:$true] %s146
          %149 = dma.vmem_to_smem %s147, 128, [#allocation5], [#allocation4]
        $region16: #{tpu_custom_call.1} parent=11 // pred_fallthru
          _
        // Predicated region
        $region17: #{tpu_custom_call.1} parent=11 // pred_check
          %p150 = pneg %p96
        $region18: #{tpu_custom_call.1} parent=11 // pred_check_branch
          %152 = sbr.rel (%p150) target = $region20
        $region19: #{tpu_custom_call.1} parent=11 // pred_region
          %s154 = ssub.s32 16, 16
          %155 = vsyncadd [#allocation7], %s154
          %s157 = sshll.u32 %s2, 4
          %s158 = int_to_ptr.vmem [resolvable:$true] %s157
          %160 = dma.vmem_to_smem %s158, 16, [#allocation6], [#allocation7]
        $region20: #{tpu_custom_call.1} parent=11 // pred_fallthru
          _
      $region12: #{tpu_custom_call.1} parent=5 // pred_fallthru
        _
      %p161 = scmp.lt.s32.totalorder %s14, 2
      // Predicated region
      $region21: #{tpu_custom_call.1} parent=5 // pred_check
        %p162 = pneg %p161
      $region22: #{tpu_custom_call.1} parent=5 // pred_check_branch
        %164 = sbr.rel (%p162) target = $region24
      $region23: #{tpu_custom_call.1} parent=5 // pred_region
        // Predicated region
        $region25: #{tpu_custom_call.1} parent=23 // pred_check
          %p165 = pneg %p48
        $region26: #{tpu_custom_call.1} parent=23 // pred_check_branch
          %167 = sbr.rel (%p165) target = $region28
        $region27: #{tpu_custom_call.1} parent=23 // pred_region
          %s168 = sand.u32 %s38, 1
          %s169 = scalar_lea.sflag [#allocation3], %s168
          %s170 = sand.u32 %s38, 1
          %s171 = smul.addr %s170, 8
          %s172 = scalar_lea.vmem [#allocation2], %s171
          %s173 = smul.u32 2, %s22
          %s175 = ssub.s32 128, 128
          %176 = vsyncadd %s169, %s175
          %s177 = smul.addr %s21, 2
          %s178 = sadd.s32 %s173, %s177
          %s179 = smul.addr %s178, 64
          %s180 = scalar_lea.hbm %s0, %s179
          %s182 = sshll.u32 %s172, 4
          %s183 = int_to_ptr.vmem [resolvable:$true] %s182
          %185 = dma.hbm_to_vmem [thread:$0]  %s180, 128, %s183, %s169
        $region28: #{tpu_custom_call.1} parent=23 // pred_fallthru
          _
      $region24: #{tpu_custom_call.1} parent=5 // pred_fallthru
        _
      %p186 = scmp.le.s32.totalorder 1, %s14
      %p187 = scmp.lt.s32.totalorder %s14, 3
      %p188 = pnand %p186, %p187
      %p189 = pneg %p188
      // Predicated region
      $region29: #{tpu_custom_call.1} parent=5 // pred_check
        _
      $region30: #{tpu_custom_call.1} parent=5 // pred_check_branch
        %191 = sbr.rel (%p188) target = $region32
      $region31: #{tpu_custom_call.1} parent=5 // pred_region
        %s192 = ssub.s32 %s14, 1
        %s193 = sand.u32 %s41, 1
        %s194 = scalar_lea.sflag [#allocation3], %s193
        %s195 = sand.u32 %s41, 1
        %s196 = smul.addr %s195, 8
        %s197 = scalar_lea.vmem [#allocation2], %s196
        // Predicated region
        $region33: #{tpu_custom_call.1} parent=31 // pred_check
          %p198 = pneg %p54
        $region34: #{tpu_custom_call.1} parent=31 // pred_check_branch
          %200 = sbr.rel (%p198) target = $region36
        $region35: #{tpu_custom_call.1} parent=31 // pred_region
          %201 = dma.done %s194, 128
        $region36: #{tpu_custom_call.1} parent=31 // pred_fallthru
          _
        // Predicated region
        $region37: #{tpu_custom_call.1} parent=31 // pred_check
          %p202 = pneg %p75
        $region38: #{tpu_custom_call.1} parent=31 // pred_check_branch
          %204 = sbr.rel (%p202) target = $region40
        $region39: #{tpu_custom_call.1} parent=31 // pred_region
          %205 = dma.done [#allocation4], 128
        $region40: #{tpu_custom_call.1} parent=31 // pred_fallthru
          _
        // Predicated region
        $region41: #{tpu_custom_call.1} parent=31 // pred_check
          %p206 = pneg %p96
        $region42: #{tpu_custom_call.1} parent=31 // pred_check_branch
          %208 = sbr.rel (%p206) target = $region44
        $region43: #{tpu_custom_call.1} parent=31 // pred_region
          %209 = dma.done [#allocation7], 16
        $region44: #{tpu_custom_call.1} parent=31 // pred_fallthru
          _
        %210 = sfence
        %s211 = sand.u32 %s41, 1
        %s212 = scalar_lea.sflag [#allocation3], %s211
        %s213 = sand.u32 %s41, 1
        %s214 = smul.addr %s213, 8
        %s215 = scalar_lea.vmem [#allocation2], %s214
        %p216 = pneg %p54
        %p217 = pneg %p51
        %p218 = pneg %p75
        %p219 = pneg %p72
        %p220 = pneg %p96
        %p221 = pneg %p93
        %p222 = pneg %p124
        %p223 = pneg %p121
        %s224 = smul.u32 2, %s24
        %p225 = scmp.lt.s32.totalorder %s23, 1
        %s226 = scalar_select %p225, %s23, 1
        %p227 = scmp.lt.s32.totalorder %s224, 1
        %s228 = scalar_select %p227, %s224, 1
        %s229 = smul.addr %s226, 2
        %s230 = sadd.s32 %s228, %s229
        %s231 = smul.addr %s230, 8
        %s232 = scalar_lea.vmem %s3, %s231
        %s233 = smul.u32 2, %s24
        %s234 = smul.u32 2, %s24
        %p235 = scmp.lt.s32.totalorder %s23, 1
        %s236 = scalar_select %p235, %s23, 1
        %p237 = scmp.lt.s32.totalorder %s234, 1
        %s238 = scalar_select %p237, %s234, 1
        %s239 = smul.addr %s236, 2
        %s240 = sadd.s32 %s238, %s239
        %s241 = smul.addr %s240, 8
        %s242 = scalar_lea.vmem %s3, %s241
        %s243 = smul.u32 2, %s24
        %v244 = vld [vmem:[%s197] ss:$4 sm:$0x3]
        %s245 = scalar_lea.vmem %s197, 1 [#allocation2]
        %v246 = vld [vmem:[%s245] ss:$4 sm:$0x3]
        %s247 = scalar_lea.vmem %s197, 2 [#allocation2]
        %v248 = vld [vmem:[%s247] ss:$4 sm:$0x3]
        %s249 = scalar_lea.vmem %s197, 3 [#allocation2]
        %v250 = vld [vmem:[%s249] ss:$4 sm:$0x3]
        %s251 = sld [smem:[#allocation5]]
        %v252 = vstv %s251
        %v253 = vmul.f32 %v244, %v252
        %s254 = sld [smem:[#allocation5 + $0x1]]
        %v255 = vstv %s254
        %v256 = vmul.f32 %v246, %v255
        %v257 = vadd.f32 %v253, %v256
        %s258 = sld [smem:[#allocation5 + $0x2]]
        %v259 = vstv %s258
        %v260 = vmul.f32 %v248, %v259
        %v261 = vadd.f32 %v257, %v260
        %s262 = sld [smem:[#allocation5 + $0x3]]
        %v263 = vstv %s262
        %v264 = vmul.f32 %v250, %v263
        %v265 = vadd.f32 %v261, %v264
        %s266 = sld [smem:[#allocation6]]
        %v267 = vstv %s266
        %v268 = vadd.f32 %v265, %v267
        %s269 = sld [smem:[#allocation5 + $0x80]]
        %v270 = vstv %s269
        %v271 = vmul.f32 %v244, %v270
        %s272 = sld [smem:[#allocation5 + $0x81]]
        %v273 = vstv %s272
        %v274 = vmul.f32 %v246, %v273
        %v275 = vadd.f32 %v271, %v274
        %s276 = sld [smem:[#allocation5 + $0x82]]
        %v277 = vstv %s276
        %v278 = vmul.f32 %v248, %v277
        %v279 = vadd.f32 %v275, %v278
        %s280 = sld [smem:[#allocation5 + $0x83]]
        %v281 = vstv %s280
        %v282 = vmul.f32 %v250, %v281
        %v283 = vadd.f32 %v279, %v282
        %s284 = sld [smem:[#allocation6 + $0x1]]
        %v285 = vstv %s284
        %v286 = vadd.f32 %v283, %v285
        %s287 = sld [smem:[#allocation5 + $0x100]]
        %v288 = vstv %s287
        %v289 = vmul.f32 %v244, %v288
        %s290 = sld [smem:[#allocation5 + $0x101]]
        %v291 = vstv %s290
        %v292 = vmul.f32 %v246, %v291
        %v293 = vadd.f32 %v289, %v292
        %s294 = sld [smem:[#allocation5 + $0x102]]
        %v295 = vstv %s294
        %v296 = vmul.f32 %v248, %v295
        %v297 = vadd.f32 %v293, %v296
        %s298 = sld [smem:[#allocation5 + $0x103]]
        %v299 = vstv %s298
        %v300 = vmul.f32 %v250, %v299
        %v301 = vadd.f32 %v297, %v300
        %s302 = sld [smem:[#allocation6 + $0x2]]
        %v303 = vstv %s302
        %v304 = vadd.f32 %v301, %v303
        %s305 = sld [smem:[#allocation5 + $0x180]]
        %v306 = vstv %s305
        %v307 = vmul.f32 %v244, %v306
        %s308 = sld [smem:[#allocation5 + $0x181]]
        %v309 = vstv %s308
        %v310 = vmul.f32 %v246, %v309
        %v311 = vadd.f32 %v307, %v310
        %s312 = sld [smem:[#allocation5 + $0x182]]
        %v313 = vstv %s312
        %v314 = vmul.f32 %v248, %v313
        %v315 = vadd.f32 %v311, %v314
        %s316 = sld [smem:[#allocation5 + $0x183]]
        %v317 = vstv %s316
        %v318 = vmul.f32 %v250, %v317
        %v319 = vadd.f32 %v315, %v318
        %s320 = sld [smem:[#allocation6 + $0x3]]
        %v321 = vstv %s320
        %v322 = vadd.f32 %v319, %v321
        %s323 = sld [smem:[#allocation5 + $0x200]]
        %v324 = vstv %s323
        %v325 = vmul.f32 %v244, %v324
        %s326 = sld [smem:[#allocation5 + $0x201]]
        %v327 = vstv %s326
        %v328 = vmul.f32 %v246, %v327
        %v329 = vadd.f32 %v325, %v328
        %s330 = sld [smem:[#allocation5 + $0x202]]
        %v331 = vstv %s330
        %v332 = vmul.f32 %v248, %v331
        %v333 = vadd.f32 %v329, %v332
        %s334 = sld [smem:[#allocation5 + $0x203]]
        %v335 = vstv %s334
        %v336 = vmul.f32 %v250, %v335
        %v337 = vadd.f32 %v333, %v336
        %s338 = sld [smem:[#allocation6 + $0x4]]
        %v339 = vstv %s338
        %v340 = vadd.f32 %v337, %v339
        %v341 = vmax.f32 %v268, %v286
        %v342 = vmax.f32 %v341, %v304
        %v343 = vmax.f32 %v342, %v322
        %v344 = vmax.f32 %v343, %v340
        %v345 = vsub.f32 %v268, %v344
        %v346 = vmul.f32 %v345, 1.442695
        %v347 = vpow.pop %v346
        %v348 = vsub.f32 %v286, %v344
        %v349 = vmul.f32 %v348, 1.442695
        %v350 = vpow.pop %v349
        %v351 = vsub.f32 %v304, %v344
        %v352 = vmul.f32 %v351, 1.442695
        %v353 = vpow.pop %v352
        %v354 = vsub.f32 %v322, %v344
        %v355 = vmul.f32 %v354, 1.442695
        %v356 = vpow.pop %v355
        %v357 = vsub.f32 %v340, %v344
        %v358 = vmul.f32 %v357, 1.442695
        %v359 = vpow.pop %v358
        %v360 = vadd.f32 %v347, %v350
        %v361 = vadd.f32 %v360, %v353
        %v362 = vadd.f32 %v361, %v356
        %v363 = vadd.f32 %v362, %v359
        %v364 = vrcp.pop %v363
        %v365 = vmul.f32 %v347, %v364
        %v366 = vmul.f32 %v350, %v364
        %v367 = vmul.f32 %v353, %v364
        %v368 = vmul.f32 %v356, %v364
        %v369 = vmul.f32 %v359, %v364
        %v370 = vlaneseq
        %vm371 = vcmp.ge.s32.totalorder %v370, 0
        %vm372 = vcmp.lt.s32.totalorder %v370, 256
        %vm373 = vmand %vm371, %vm372
        %374 = vst.msk [vmem:[%s242] ss:$8 sm:$0x3] %vm373, %v365
        %375 = vst.msk [vmem:[%s242] ss:$8 sm:$0x0] %vm373, %v365
        %s376 = scalar_lea.vmem %s242, 1
        %377 = vst.msk [vmem:[%s376] ss:$8 sm:$0x3] %vm373, %v366
        %378 = vst.msk [vmem:[%s376] ss:$8 sm:$0x0] %vm373, %v366
        %s379 = scalar_lea.vmem %s242, 2
        %380 = vst.msk [vmem:[%s379] ss:$8 sm:$0x3] %vm373, %v367
        %381 = vst.msk [vmem:[%s379] ss:$8 sm:$0x0] %vm373, %v367
        %s382 = scalar_lea.vmem %s242, 3
        %383 = vst.msk [vmem:[%s382] ss:$8 sm:$0x3] %vm373, %v368
        %384 = vst.msk [vmem:[%s382] ss:$8 sm:$0x0] %vm373, %v368
        %s385 = scalar_lea.vmem %s242, 4
        %386 = vst.msk [vmem:[%s385] ss:$8 sm:$0x3] %vm373, %v369
        %387 = vst.msk [vmem:[%s385] ss:$8 sm:$0x0] %vm373, %v369
        %s388 = smul.u32 2, %s24
        %p389 = scmp.lt.s32.totalorder %s23, 1
        %s390 = scalar_select %p389, %s23, 1
        %p391 = scmp.lt.s32.totalorder %s388, 1
        %s392 = scalar_select %p391, %s388, 1
        %s393 = smul.addr %s390, 2
        %s394 = sadd.s32 %s392, %s393
        %s395 = smul.addr %s394, 8
        %s396 = scalar_lea.vmem %s3, %s395
        // Predicated region
        $region45: #{tpu_custom_call.1} parent=31 // pred_check
          %p397 = pneg %p121
        $region46: #{tpu_custom_call.1} parent=31 // pred_check_branch
          %399 = sbr.rel (%p397) target = $region48
        $region47: #{tpu_custom_call.1} parent=31 // pred_region
          %s400 = smul.u32 2, %s24
        $region48: #{tpu_custom_call.1} parent=31 // pred_fallthru
          _
      $region32: #{tpu_custom_call.1} parent=5 // pred_fallthru
        _
      %p401 = scmp.le.s32.totalorder 2, %s14
      // Predicated region
      $region49: #{tpu_custom_call.1} parent=5 // pred_check
        %p402 = pneg %p401
      $region50: #{tpu_custom_call.1} parent=5 // pred_check_branch
        %404 = sbr.rel (%p402) target = $region52
      $region51: #{tpu_custom_call.1} parent=5 // pred_region
        %s405 = ssub.s32 %s14, 2
        // Predicated region
        $region53: #{tpu_custom_call.1} parent=51 // pred_check
          %p406 = pneg %p127
        $region54: #{tpu_custom_call.1} parent=51 // pred_check_branch
          %408 = sbr.rel (%p406) target = $region56
        $region55: #{tpu_custom_call.1} parent=51 // pred_region
          %s409 = smul.u32 2, %s26
          %p410 = scmp.lt.s32.totalorder %s25, 1
          %s411 = scalar_select %p410, %s25, 1
          %p412 = scmp.lt.s32.totalorder %s409, 1
          %s413 = scalar_select %p412, %s409, 1
          %s414 = smul.addr %s411, 2
          %s415 = sadd.s32 %s413, %s414
          %s416 = smul.addr %s415, 8
          %s417 = scalar_lea.vmem %s3, %s416
        $region56: #{tpu_custom_call.1} parent=51 // pred_fallthru
          _
      $region52: #{tpu_custom_call.1} parent=5 // pred_fallthru
        _
    $region6: #{tpu_custom_call.1} parent=1 // loop_footer
      %s18 = sadd.s32 1, %s14
    $region7: #{tpu_custom_call.1} parent=1 // loop_footer_branch
      %13 = sbr.rel target = $region3
    $region8: #{tpu_custom_call.1} parent=1 // loop_exit
      _
    %418 = vsyncpa [#allocation3], 1
    %s419 = scalar_lea.sflag [#allocation3], 1
    %420 = vsyncpa %s419, 1
    %421 = vsyncpa [#allocation4], 1
    %s422 = scalar_lea.sflag [#allocation4], 1
    %423 = vsyncpa %s422, 1
    %424 = vsyncpa [#allocation7], 1

</llo_original>
